<compile_context>
chip_gen: v5e
topology: v5e:2x2
jax: 0.10.0
libtpu: 0.0.40
codegen_flags: <defaults>
</compile_context>

<pallas_src>
import jax
import jax.numpy as jnp
from jax.experimental import pallas as pl
from jax.experimental.pallas import tpu as pltpu

D_IN, D_H1, D_H2, D_OUT = 6, 128, 64, 12
D_IN_PAD = 8      # K padded 6 -> 8 so layer 1 runs as one MXU pass
D_H2_PAD = 128    # hidden-2 padded to full lane width (lane-dense middle layer)


def mlp_kernel(x_ref, w1_ref, b1_ref, w2_ref, b2_ref, w3_ref, b3_ref, o_ref):
    # ---- Layer 1: Linear(6 -> 128), K zero-padded to 8, one MXU pass + ReLU.
    h1 = jnp.dot(x_ref[...], w1_ref[...],
                 preferred_element_type=jnp.float32) + b1_ref[...]      # (tb, 128)
    h1 = jnp.maximum(h1, 0.0)
    # Dropout(0.3): identity at inference.
    # TODO(synk): training-mode dropout would use pltpu.prng_seed +
    # pltpu.prng_random_bits to build a keep mask and rescale by 1/(1-p).

    # ---- Layer 2: Linear(128 -> 64, zero-padded to 128 lanes) + ReLU.
    h2 = jnp.dot(h1, w2_ref[...],
                 preferred_element_type=jnp.float32) + b2_ref[...]      # (tb, 128)
    h2 = jnp.maximum(h2, 0.0)                       # padded cols 64..127 stay 0
    # Dropout(0.3): identity at inference.

    # ---- Layer 3: Linear(64 padded to 128 -> 12) + Sigmoid, true-width store.
    z = jnp.dot(h2, w3_ref[...],
                preferred_element_type=jnp.float32) + b3_ref[...]       # (tb, 12)
    o_ref[...] = jax.nn.sigmoid(z).astype(o_ref.dtype)


def _pick_tb(B):
    # Small batches: single grid step (per-step overhead would dominate otherwise).
    if B <= 512:
        return B
    # Large batches: big MXU-aligned tiles, capped at 2048, sized so the grid
    # has >= 2 steps (v7x has 2 TensorCores splitting the "parallel" axis).
    return min(2048, pl.cdiv(pl.cdiv(B, 2), 256) * 256)


def pad_params(params):
    """One-time zero-padding of weights/biases to MXU/lane-friendly shapes.

    Exactness: padded x columns (6..7) hit zero w1 rows; padded w2/b2 columns
    give h2 padded lanes = relu(0) = 0, which then hit zero-padded w3 rows.
    """
    w1 = jnp.pad(params["w1"], ((0, D_IN_PAD - D_IN), (0, 0)))          # (8, 128)
    b1 = params["b1"]                                                    # (1, 128)
    w2 = jnp.pad(params["w2"], ((0, 0), (0, D_H2_PAD - D_H2)))           # (128, 128)
    b2 = jnp.pad(params["b2"], ((0, 0), (0, D_H2_PAD - D_H2)))           # (1, 128)
    w3 = jnp.pad(params["w3"], ((0, D_H2_PAD - D_H2), (0, 0)))           # (128, 12)
    b3 = params["b3"]                                                    # (1, 12)
    return dict(w1=w1, b1=b1, w2=w2, b2=b2, w3=w3, b3=b3)


def mlp_forward(x, padded_params, *, tb=None):
    """x: (B, 6) float32.  padded_params: output of pad_params()."""
    B = x.shape[0]
    if tb is None:
        tb = _pick_tb(B)
    Bp = pl.cdiv(B, tb) * tb

    # Pad features 6 -> 8 (for the K=8 MXU pass) and batch up to a tile multiple.
    x = jnp.pad(x, ((0, Bp - B), (0, D_IN_PAD - D_IN)))

    pp = padded_params
    out = pl.pallas_call(
        mlp_kernel,
        out_shape=jax.ShapeDtypeStruct((Bp, D_OUT), jnp.float32),
        grid_spec=pl.GridSpec(
            grid=(Bp // tb,),
            in_specs=[
                pl.BlockSpec((tb, D_IN_PAD), lambda i: (i, 0)),          # x tile
                pl.BlockSpec((D_IN_PAD, D_H1), lambda i: (0, 0)),        # w1 (resident)
                pl.BlockSpec((1, D_H1), lambda i: (0, 0)),               # b1
                pl.BlockSpec((D_H1, D_H2_PAD), lambda i: (0, 0)),        # w2 (resident)
                pl.BlockSpec((1, D_H2_PAD), lambda i: (0, 0)),           # b2
                pl.BlockSpec((D_H2_PAD, D_OUT), lambda i: (0, 0)),       # w3 (resident)
                pl.BlockSpec((1, D_OUT), lambda i: (0, 0)),              # b3
            ],
            out_specs=pl.BlockSpec((tb, D_OUT), lambda i: (i, 0)),       # true-width store
        ),
        compiler_params=pltpu.CompilerParams(
            dimension_semantics=("parallel",),
        ),
    )(x, pp["w1"], pp["b1"], pp["w2"], pp["b2"], pp["w3"], pp["b3"])

    return out if Bp == B else out[:B]


def init_params(key):
    """Deterministic init mimicking nn.Linear shapes (weights stored (in, out))."""
    ks = jax.random.split(key, 6)

    def lin(kw, kb, fan_in, fan_out):
        bound = 1.0 / float(jnp.sqrt(float(fan_in)))
        w = jax.random.uniform(kw, (fan_in, fan_out), jnp.float32, -bound, bound)
        b = jax.random.uniform(kb, (1, fan_out), jnp.float32, -bound, bound)
        return w, b

    w1, b1 = lin(ks[0], ks[1], D_IN, D_H1)
    w2, b2 = lin(ks[2], ks[3], D_H1, D_H2)
    w3, b3 = lin(ks[4], ks[5], D_H2, D_OUT)
    return dict(w1=w1, b1=b1, w2=w2, b2=b2, w3=w3, b3=b3)


def mlp_reference(x, p):
    h1 = jnp.maximum(x @ p["w1"] + p["b1"], 0.0)
    h2 = jnp.maximum(h1 @ p["w2"] + p["b2"], 0.0)
    return jax.nn.sigmoid(h2 @ p["w3"] + p["b3"])


if __name__ == "__main__":
    key = jax.random.PRNGKey(0)
    kp, kx1, kx2 = jax.random.split(key, 3)
    params = init_params(kp)
    padded = pad_params(params)          # one-time padding (not per forward call)

    # Small batch: single grid step, no batch padding.
    B1 = 16
    x1 = jax.random.normal(kx1, (B1, D_IN), jnp.float32)
    out1 = jax.block_until_ready(mlp_forward(x1, padded))
    ref1 = mlp_reference(x1, params)
    assert out1.shape == (B1, D_OUT)
    assert jnp.allclose(out1, ref1, atol=1e-5, rtol=1e-5)

    # Larger batch: exercises batch padding + multi-step "parallel" grid.
    B2 = 600
    x2 = jax.random.normal(kx2, (B2, D_IN), jnp.float32)
    out2 = jax.block_until_ready(mlp_forward(x2, padded))
    ref2 = mlp_reference(x2, params)
    assert out2.shape == (B2, D_OUT)
    assert jnp.allclose(out2, ref2, atol=1e-5, rtol=1e-5)

    print("KERNEL_OK")
</pallas_src>

<mosaic_0001>
module attributes {stable_mosaic.version = 11 : i64} {
  func.func @mlp_kernel(%arg0: i32, %arg1: memref<16x8xf32, #tpu.memory_space<vmem>>, %arg2: memref<8x128xf32, #tpu.memory_space<vmem>>, %arg3: memref<1x128xf32, #tpu.memory_space<vmem>>, %arg4: memref<128x128xf32, #tpu.memory_space<vmem>>, %arg5: memref<1x128xf32, #tpu.memory_space<vmem>>, %arg6: memref<128x12xf32, #tpu.memory_space<vmem>>, %arg7: memref<1x12xf32, #tpu.memory_space<vmem>>, %arg8: memref<16x12xf32, #tpu.memory_space<vmem>>) attributes {dimension_semantics = [#tpu.dimension_semantics<parallel>], iteration_bounds = array<i64: 1>, scalar_prefetch = 0 : i64, scratch_operands = 0 : i64, tpu.core_type = #tpu.core_type<tc>, window_params = [{transform_indices = @transform_0, window_bounds = array<i64: 16, 8>}, {pipeline_mode = #tpu.pipeline_mode<synchronous>, transform_indices = @transform_1, window_bounds = array<i64: 8, 128>}, {pipeline_mode = #tpu.pipeline_mode<synchronous>, transform_indices = @transform_2, window_bounds = array<i64: 1, 128>}, {pipeline_mode = #tpu.pipeline_mode<synchronous>, transform_indices = @transform_3, window_bounds = array<i64: 128, 128>}, {pipeline_mode = #tpu.pipeline_mode<synchronous>, transform_indices = @transform_4, window_bounds = array<i64: 1, 128>}, {pipeline_mode = #tpu.pipeline_mode<synchronous>, transform_indices = @transform_5, window_bounds = array<i64: 128, 12>}, {pipeline_mode = #tpu.pipeline_mode<synchronous>, transform_indices = @transform_6, window_bounds = array<i64: 1, 12>}, {transform_indices = @transform_7, window_bounds = array<i64: 16, 12>}]} {
    %c0 = arith.constant 0 : index
    %c0_0 = arith.constant 0 : index
    %0 = vector.load %arg1[%c0, %c0_0] : memref<16x8xf32, #tpu.memory_space<vmem>>, vector<16x8xf32>
    %c0_1 = arith.constant 0 : index
    %c0_2 = arith.constant 0 : index
    %1 = vector.load %arg2[%c0_1, %c0_2] : memref<8x128xf32, #tpu.memory_space<vmem>>, vector<8x128xf32>
    %cst = arith.constant dense<0.000000e+00> : vector<16x128xf32>
    %2 = tpu.matmul %0, %1, %cst {dimension_numbers = #tpu.dot_dimension_numbers<[1], [0], [0], [1], [0, 0, 1, 1], [], []>} : vector<16x8xf32>, vector<8x128xf32>, vector<16x128xf32> -> vector<16x128xf32>
    %c0_3 = arith.constant 0 : index
    %c0_4 = arith.constant 0 : index
    %3 = vector.load %arg3[%c0_3, %c0_4] : memref<1x128xf32, #tpu.memory_space<vmem>>, vector<1x128xf32>
    %4 = vector.broadcast %3 : vector<1x128xf32> to vector<16x128xf32>
    %5 = arith.addf %2, %4 : vector<16x128xf32>
    %cst_5 = arith.constant 0.000000e+00 : f32
    %6 = vector.broadcast %cst_5 : f32 to vector<16x128xf32>
    %7 = arith.maximumf %5, %6 : vector<16x128xf32>
    %c0_6 = arith.constant 0 : index
    %c0_7 = arith.constant 0 : index
    %8 = vector.load %arg4[%c0_6, %c0_7] : memref<128x128xf32, #tpu.memory_space<vmem>>, vector<128x128xf32>
    %cst_8 = arith.constant dense<0.000000e+00> : vector<16x128xf32>
    %9 = tpu.matmul %7, %8, %cst_8 {dimension_numbers = #tpu.dot_dimension_numbers<[1], [0], [0], [1], [0, 0, 1, 1], [], []>} : vector<16x128xf32>, vector<128x128xf32>, vector<16x128xf32> -> vector<16x128xf32>
    %c0_9 = arith.constant 0 : index
    %c0_10 = arith.constant 0 : index
    %10 = vector.load %arg5[%c0_9, %c0_10] : memref<1x128xf32, #tpu.memory_space<vmem>>, vector<1x128xf32>
    %11 = vector.broadcast %10 : vector<1x128xf32> to vector<16x128xf32>
    %12 = arith.addf %9, %11 : vector<16x128xf32>
    %cst_11 = arith.constant 0.000000e+00 : f32
    %13 = vector.broadcast %cst_11 : f32 to vector<16x128xf32>
    %14 = arith.maximumf %12, %13 : vector<16x128xf32>
    %c0_12 = arith.constant 0 : index
    %c0_13 = arith.constant 0 : index
    %15 = vector.load %arg6[%c0_12, %c0_13] : memref<128x12xf32, #tpu.memory_space<vmem>>, vector<128x12xf32>
    %cst_14 = arith.constant dense<0.000000e+00> : vector<16x12xf32>
    %16 = tpu.matmul %14, %15, %cst_14 {dimension_numbers = #tpu.dot_dimension_numbers<[1], [0], [0], [1], [0, 0, 1, 1], [], []>} : vector<16x128xf32>, vector<128x12xf32>, vector<16x12xf32> -> vector<16x12xf32>
    %c0_15 = arith.constant 0 : index
    %c0_16 = arith.constant 0 : index
    %17 = vector.load %arg7[%c0_15, %c0_16] : memref<1x12xf32, #tpu.memory_space<vmem>>, vector<1x12xf32>
    %18 = vector.broadcast %17 : vector<1x12xf32> to vector<16x12xf32>
    %19 = arith.addf %16, %18 : vector<16x12xf32>
    %20 = arith.negf %19 : vector<16x12xf32>
    %21 = math.exp %20 : vector<16x12xf32>
    %cst_17 = arith.constant 1.000000e+00 : f32
    %22 = vector.broadcast %cst_17 : f32 to vector<16x12xf32>
    %23 = arith.addf %22, %21 : vector<16x12xf32>
    %24 = arith.divf %22, %23 : vector<16x12xf32>
    %c0_18 = arith.constant 0 : index
    %c0_19 = arith.constant 0 : index
    %25 = vector.load %arg8[%c0_18, %c0_19] : memref<16x12xf32, #tpu.memory_space<vmem>>, vector<16x12xf32>
    tpu.vector_store %arg8[%c0_18, %c0_19], %24 {strides = array<i32>} : memref<16x12xf32, #tpu.memory_space<vmem>>, vector<16x12xf32>,
    return
  }
  func.func @transform_0(%arg0: i32) -> (i32, i32) {
    %c0_i32 = arith.constant 0 : i32
    %c0_i32_0 = arith.constant 0 : i32
    return %arg0, %c0_i32 : i32, i32
  }
  func.func @transform_1(%arg0: i32) -> (i32, i32) {
    %c0_i32 = arith.constant 0 : i32
    %c0_i32_0 = arith.constant 0 : i32
    %c0_i32_1 = arith.constant 0 : i32
    return %c0_i32, %c0_i32_0 : i32, i32
  }
  func.func @transform_2(%arg0: i32) -> (i32, i32) {
    %c0_i32 = arith.constant 0 : i32
    %c0_i32_0 = arith.constant 0 : i32
    %c0_i32_1 = arith.constant 0 : i32
    return %c0_i32, %c0_i32_0 : i32, i32
  }
  func.func @transform_3(%arg0: i32) -> (i32, i32) {
    %c0_i32 = arith.constant 0 : i32
    %c0_i32_0 = arith.constant 0 : i32
    %c0_i32_1 = arith.constant 0 : i32
    return %c0_i32, %c0_i32_0 : i32, i32
  }
  func.func @transform_4(%arg0: i32) -> (i32, i32) {
    %c0_i32 = arith.constant 0 : i32
    %c0_i32_0 = arith.constant 0 : i32
    %c0_i32_1 = arith.constant 0 : i32
    return %c0_i32, %c0_i32_0 : i32, i32
  }
  func.func @transform_5(%arg0: i32) -> (i32, i32) {
    %c0_i32 = arith.constant 0 : i32
    %c0_i32_0 = arith.constant 0 : i32
    %c0_i32_1 = arith.constant 0 : i32
    return %c0_i32, %c0_i32_0 : i32, i32
  }
  func.func @transform_6(%arg0: i32) -> (i32, i32) {
    %c0_i32 = arith.constant 0 : i32
    %c0_i32_0 = arith.constant 0 : i32
    %c0_i32_1 = arith.constant 0 : i32
    return %c0_i32, %c0_i32_0 : i32, i32
  }
  func.func @transform_7(%arg0: i32) -> (i32, i32) {
    %c0_i32 = arith.constant 0 : i32
    %c0_i32_0 = arith.constant 0 : i32
    return %arg0, %c0_i32 : i32, i32
  }
}

</mosaic_0001>

<llo_original>
// kernel: tpu_custom_call.1
$region0: #{tpu_custom_call.1}
  #allocation0 [shape = 'u32[]', space=smem, size = 0x4, offset = 0x4, fixed_abs, tag = 'smem constant byte address 0x4 - core index']
  #allocation1 [shape = 'u32[72,128]{1,0:T(1,128)}', space=vmem, size = 0x9000, scoped, tag = 'internal scratch']
  %s0 = inlined_call_operand.vmem [shape: f32[16,8], index: 0, kind: input, shape index: {}]
  %s1 = inlined_call_operand.vmem [shape: f32[8,128], index: 1, kind: input, shape index: {}]
  %s2 = inlined_call_operand.vmem [shape: f32[1,128], index: 2, kind: input, shape index: {}]
  %s3 = inlined_call_operand.vmem [shape: f32[128,128], index: 3, kind: input, shape index: {}]
  %s4 = inlined_call_operand.vmem [shape: f32[1,128], index: 4, kind: input, shape index: {}]
  %s5 = inlined_call_operand.vmem [shape: f32[128,12], index: 5, kind: input, shape index: {}]
  %s6 = inlined_call_operand.vmem [shape: f32[1,12], index: 6, kind: input, shape index: {}]
  %s7 = inlined_call_operand.hbm [shape: f32[16,12], index: 7, kind: output, shape index: {}]
  %s8 = sld [smem:[#allocation0]]
  $region38: #{tpu_custom_call.1} parent=0
    _
  %s10 = ssub.s32 1, %s8
  %s11 = scalar_select 0, %s10, %s8
  $region1: #{tpu_custom_call.1} parent=0
    #allocation2 [shape = 'u8[8192]{0}', space=vmem, size = 0x2000, scoped, tag = 'output window, operand 0, single buffered']
    #allocation3 [shape = 's32[1]{0}', space=sflag, size = 0x4, scoped, tag = 'scoped memory for tpu_custom_call.1']
    %12 = vsyncpa [#allocation3], 0
    // Predicated region
    $region2: #{tpu_custom_call.1} parent=1 // pred_check
      _
    $region3: #{tpu_custom_call.1} parent=1 // pred_check_branch
      %14 = sbr.rel (0) target = $region5
    $region4: #{tpu_custom_call.1} parent=1 // pred_region
      _
    $region5: #{tpu_custom_call.1} parent=1 // pred_fallthru
      _
    // Predicated region
    $region6: #{tpu_custom_call.1} parent=1 // pred_check
      _
    $region7: #{tpu_custom_call.1} parent=1 // pred_check_branch
      %16 = sbr.rel (0) target = $region9
    $region8: #{tpu_custom_call.1} parent=1 // pred_region
      _
    $region9: #{tpu_custom_call.1} parent=1 // pred_fallthru
      _
    // Predicated region
    $region10: #{tpu_custom_call.1} parent=1 // pred_check
      _
    $region11: #{tpu_custom_call.1} parent=1 // pred_check_branch
      %18 = sbr.rel (0) target = $region13
    $region12: #{tpu_custom_call.1} parent=1 // pred_region
      _
    $region13: #{tpu_custom_call.1} parent=1 // pred_fallthru
      _
    // Predicated region
    $region14: #{tpu_custom_call.1} parent=1 // pred_check
      _
    $region15: #{tpu_custom_call.1} parent=1 // pred_check_branch
      %20 = sbr.rel (0) target = $region17
    $region16: #{tpu_custom_call.1} parent=1 // pred_region
      _
    $region17: #{tpu_custom_call.1} parent=1 // pred_fallthru
      _
    // Predicated region
    $region18: #{tpu_custom_call.1} parent=1 // pred_check
      _
    $region19: #{tpu_custom_call.1} parent=1 // pred_check_branch
      %22 = sbr.rel (0) target = $region21
    $region20: #{tpu_custom_call.1} parent=1 // pred_region
      _
    $region21: #{tpu_custom_call.1} parent=1 // pred_fallthru
      _
    // Predicated region
    $region22: #{tpu_custom_call.1} parent=1 // pred_check
      _
    $region23: #{tpu_custom_call.1} parent=1 // pred_check_branch
      %24 = sbr.rel (0) target = $region25
    $region24: #{tpu_custom_call.1} parent=1 // pred_region
      _
    $region25: #{tpu_custom_call.1} parent=1 // pred_fallthru
      _
    // Predicated region
    $region26: #{tpu_custom_call.1} parent=1 // pred_check
      _
    $region27: #{tpu_custom_call.1} parent=1 // pred_check_branch
      %26 = sbr.rel (0) target = $region29
    $region28: #{tpu_custom_call.1} parent=1 // pred_region
      _
    $region29: #{tpu_custom_call.1} parent=1 // pred_fallthru
      _
    %v27 = vld [vmem:[%s0] sm:$0xff]
    %v28 = vld [vmem:[%s0 + $0x8] sm:$0xff]
    %v29 = vld [vmem:[%s1] sm:$0xff]
    %v30 = vld [vmem:[%s2] sm:$0x1]
    %v32 = vperm.slane %v30, 0
    %vm34 = vcmask 64512
    %v36 = vsel %vm34, %v27, 0
    %v39 = vsel %vm34, %v28, 0
    %41 = vmatpush.msra.mxu0 0.0
    %42 = vmatpush.msra.mxu0 0.0
    %43 = vmatpush.msra.mxu0 0.0
    %44 = vmatpush.msra.mxu0 0.0
    %45 = vmatpush.msra.mxu0 0.0
    %46 = vmatpush.msra.mxu0 0.0
    %47 = vmatpush.msra.mxu0 0.0
    %48 = vmatpush.msra.mxu0 0.0
    %49 = vmatpush.msra.mxu0 0.0
    %50 = vmatpush.msra.mxu0 0.0
    %51 = vmatpush.msra.mxu0 0.0
    %52 = vmatpush.msra.mxu0 0.0
    %53 = vmatpush.msra.mxu0 0.0
    %54 = vmatpush.msra.mxu0 0.0
    %55 = vmatpush.msra.mxu0 0.0
    %56 = vmatpush.msra.mxu0 %v29
    %57 = vmatmul.f32.gmra.mxu0 %v36
    %v58 = vpop.f32.mrf.mxu0
    %v59 = vadd.f32 %v32, %v58
    %60 = vmatmul.f32.gmra.mxu0 %v39
    %v61 = vpop.f32.mrf.mxu0
    %v62 = vadd.f32 %v32, %v61
    %63 = vdwg.mxu0
    %v64 = vmax.f32 %v59, 0.0
    %v65 = vmax.f32 %v62, 0.0
    %v66 = vld [vmem:[%s3] sm:$0xff]
    %v67 = vld [vmem:[%s3 + $0x8] sm:$0xff]
    %v68 = vld [vmem:[%s3 + $0x10] sm:$0xff]
    %v69 = vld [vmem:[%s3 + $0x18] sm:$0xff]
    %v70 = vld [vmem:[%s3 + $0x20] sm:$0xff]
    %v71 = vld [vmem:[%s3 + $0x28] sm:$0xff]
    %v72 = vld [vmem:[%s3 + $0x30] sm:$0xff]
    %v73 = vld [vmem:[%s3 + $0x38] sm:$0xff]
    %v74 = vld [vmem:[%s3 + $0x40] sm:$0xff]
    %v75 = vld [vmem:[%s3 + $0x48] sm:$0xff]
    %v76 = vld [vmem:[%s3 + $0x50] sm:$0xff]
    %v77 = vld [vmem:[%s3 + $0x58] sm:$0xff]
    %v78 = vld [vmem:[%s3 + $0x60] sm:$0xff]
    %v79 = vld [vmem:[%s3 + $0x68] sm:$0xff]
    %v80 = vld [vmem:[%s3 + $0x70] sm:$0xff]
    %v81 = vld [vmem:[%s3 + $0x78] sm:$0xff]
    %v82 = vld [vmem:[%s4] sm:$0x1]
    %v84 = vperm.slane %v82, 0
    %86 = vmatpush.msra.mxu0 %v81
    %87 = vmatpush.msra.mxu0 %v80
    %88 = vmatpush.msra.mxu0 %v79
    %89 = vmatpush.msra.mxu0 %v78
    %90 = vmatpush.msra.mxu0 %v77
    %91 = vmatpush.msra.mxu0 %v76
    %92 = vmatpush.msra.mxu0 %v75
    %93 = vmatpush.msra.mxu0 %v74
    %94 = vmatpush.msra.mxu0 %v73
    %95 = vmatpush.msra.mxu0 %v72
    %96 = vmatpush.msra.mxu0 %v71
    %97 = vmatpush.msra.mxu0 %v70
    %98 = vmatpush.msra.mxu0 %v69
    %99 = vmatpush.msra.mxu0 %v68
    %100 = vmatpush.msra.mxu0 %v67
    %101 = vmatpush.msra.mxu0 %v66
    %102 = vmatmul.f32.gmra.mxu0 %v64
    %v103 = vpop.f32.mrf.mxu0
    %v104 = vadd.f32 %v84, %v103
    %105 = vmatmul.f32.gmra.mxu0 %v65
    %v106 = vpop.f32.mrf.mxu0
    %v107 = vadd.f32 %v84, %v106
    %108 = vdwg.mxu0
    %v109 = vmax.f32 %v104, 0.0
    %v110 = vmax.f32 %v107, 0.0
    %v111 = vld [vmem:[%s5] sm:$0xff]
    %v112 = vld [vmem:[%s5 + $0x8] sm:$0xff]
    %v113 = vld [vmem:[%s5 + $0x10] sm:$0xff]
    %v114 = vld [vmem:[%s5 + $0x18] sm:$0xff]
    %v115 = vld [vmem:[%s5 + $0x20] sm:$0xff]
    %v116 = vld [vmem:[%s5 + $0x28] sm:$0xff]
    %v117 = vld [vmem:[%s5 + $0x30] sm:$0xff]
    %v118 = vld [vmem:[%s5 + $0x38] sm:$0xff]
    %v119 = vld [vmem:[%s5 + $0x40] sm:$0xff]
    %v120 = vld [vmem:[%s5 + $0x48] sm:$0xff]
    %v121 = vld [vmem:[%s5 + $0x50] sm:$0xff]
    %v122 = vld [vmem:[%s5 + $0x58] sm:$0xff]
    %v123 = vld [vmem:[%s5 + $0x60] sm:$0xff]
    %v124 = vld [vmem:[%s5 + $0x68] sm:$0xff]
    %v125 = vld [vmem:[%s5 + $0x70] sm:$0xff]
    %v126 = vld [vmem:[%s5 + $0x78] sm:$0xff]
    %v127 = vld [vmem:[%s6] sm:$0x1]
    %v129 = vperm.slane %v127, 0
    %131 = vmatpush.msra.mxu0 %v126
    %132 = vmatpush.msra.mxu0 %v125
    %133 = vmatpush.msra.mxu0 %v124
    %134 = vmatpush.msra.mxu0 %v123
    %135 = vmatpush.msra.mxu0 %v122
    %136 = vmatpush.msra.mxu0 %v121
    %137 = vmatpush.msra.mxu0 %v120
    %138 = vmatpush.msra.mxu0 %v119
    %139 = vmatpush.msra.mxu0 %v118
    %140 = vmatpush.msra.mxu0 %v117
    %141 = vmatpush.msra.mxu0 %v116
    %142 = vmatpush.msra.mxu0 %v115
    %143 = vmatpush.msra.mxu0 %v114
    %144 = vmatpush.msra.mxu0 %v113
    %145 = vmatpush.msra.mxu0 %v112
    %146 = vmatpush.msra.mxu0 %v111
    %147 = vmatmul.f32.gmra.mxu0 %v109
    %v148 = vpop.f32.mrf.mxu0
    %v149 = vadd.f32 %v129, %v148
    %150 = vmatmul.f32.gmra.mxu0 %v110
    %v151 = vpop.f32.mrf.mxu0
    %v152 = vadd.f32 %v129, %v151
    %153 = vdwg.mxu0
    %v154 = vxor.u32 %v149, 2147483648
    %v155 = vxor.u32 %v152, 2147483648
    %v156 = vmul.f32 %v154, 1.442695
    %v157 = vpow.pop %v156
    %v158 = vmul.f32 %v155, 1.442695
    %v159 = vpow.pop %v158
    %v160 = vadd.f32 %v157, 1.0
    %v161 = vadd.f32 %v159, 1.0
    %v162 = vrcp.pop %v160
    %v163 = vmul.f32 %v160, %v162
    %v164 = vsub.f32 1.0, %v163
    %v165 = vmul.f32 %v162, %v164
    %v166 = vadd.f32 %v162, %v165
    %vm167 = vweird.f32 %v160
    %vm168 = vweird.f32 %v162
    %vm169 = vmor %vm167, %vm168
    %v170 = vsel %vm169, %v162, %v166
    %v171 = vand.u32 2147483647, %v160
    %vm172 = vcmp.eq.f32.partialorder %v171, 8.507059e+37
    %v173 = vand.u32 %v160, 2147483648
    %v174 = vor.u32 1.1754944e-38, %v173
    %v175 = vsel %vm172, %v174, %v170
    %v176 = vmul.f32 1.0, %v175
    %v177 = vrcp.pop %v161
    %v178 = vmul.f32 %v161, %v177
    %v179 = vsub.f32 1.0, %v178
    %v180 = vmul.f32 %v177, %v179
    %v181 = vadd.f32 %v177, %v180
    %vm182 = vweird.f32 %v161
    %vm183 = vweird.f32 %v177
    %vm184 = vmor %vm182, %vm183
    %v185 = vsel %vm184, %v177, %v181
    %v186 = vand.u32 2147483647, %v161
    %vm187 = vcmp.eq.f32.partialorder %v186, 8.507059e+37
    %v188 = vand.u32 %v161, 2147483648
    %v189 = vor.u32 1.1754944e-38, %v188
    %v190 = vsel %vm187, %v189, %v185
    %v191 = vmul.f32 1.0, %v190
    %vm192 = vcmask 97280
    %193 = vst.msk [vmem:[#allocation2] sm:$0xff] %vm192, %v176
    %194 = vst.msk [vmem:[#allocation2 + $0x8] sm:$0xff] %vm192, %v191
    // Predicated region
    $region30: #{tpu_custom_call.1} parent=1 // pred_check
      _
    $region31: #{tpu_custom_call.1} parent=1 // pred_check_branch
      %196 = sbr.rel (0) target = $region33
    $region32: #{tpu_custom_call.1} parent=1 // pred_region
      %198 = vsyncadd [#allocation3], 0
      %s199 = sshll.u32 [#allocation2], 4
      %s200 = int_to_ptr.vmem [resolvable:$true] %s199
      %s201 = sshll.u32 %s7, 4
      %s202 = int_to_ptr.hbm [resolvable:$true] %s201
      %207 = dma.vmem_to_hbm [thread:$0]  %s200, 256, %s202, [#allocation3], 128, 128, 8
    $region33: #{tpu_custom_call.1} parent=1 // pred_fallthru
      _
    // Predicated region
    $region34: #{tpu_custom_call.1} parent=1 // pred_check
      _
    $region35: #{tpu_custom_call.1} parent=1 // pred_check_branch
      %209 = sbr.rel (0) target = $region37
    $region36: #{tpu_custom_call.1} parent=1 // pred_region
      %211 = dma.done [#allocation3], 256
    $region37: #{tpu_custom_call.1} parent=1 // pred_fallthru
      _
    %212 = vsyncpa [#allocation3], 1

</llo_original>
